<compile_context>
chip_gen: v6e
topology: v6e:2x2x1
jax: 0.10.0
libtpu: 0.0.40
codegen_flags: <defaults>
</compile_context>

<pallas_src>
import numpy as np
import jax
import jax.numpy as jnp
from jax.experimental import pallas as pl
from jax.experimental.pallas import tpu as pltpu


def _round_up(a, b):
    return (a + b - 1) // b * b


def _pick_neuron_tile(n_pad):
    # Largest lane-dense tile that evenly divides the padded neuron count.
    for t in (512, 256, 128):
        if n_pad % t == 0:
            return t
    return 128


def genius_brain_kernel_single(x_ref, wt_ref, thr_ref, out_ref):
    # Whole contraction in one MXU pass; fuse threshold-subtract + ReLU into the store.
    stim = jnp.dot(x_ref[...], wt_ref[...], preferred_element_type=jnp.float32)
    out_ref[...] = jnp.maximum(stim - thr_ref[...], 0.0).astype(out_ref.dtype)


def genius_brain_kernel_multi(x_ref, wt_ref, thr_ref, out_ref, acc_ref):
    k = pl.program_id(2)

    @pl.when(k == 0)
    def _():
        acc_ref[...] = jnp.zeros_like(acc_ref)

    # stim tile accumulation on the MXU, f32 accumulator resident in VMEM.
    acc_ref[...] += jnp.dot(x_ref[...], wt_ref[...],
                            preferred_element_type=jnp.float32)

    @pl.when(k == pl.num_programs(2) - 1)
    def _():
        # fire = clamp(stim - thresholds, min=0); thr_ref is (1, tn), broadcasts over rows.
        out_ref[...] = jnp.maximum(acc_ref[...] - thr_ref[...], 0.0).astype(out_ref.dtype)


def genius_brain_forward(x, weights, thresholds):
    """GeniusBrain.forward: relu(x @ W.T - thresholds).

    x: [B, N] float32, weights: [N, N] float32, thresholds: [N] float32.
    Returns [B, N] float32.
    """
    x = jnp.asarray(x, jnp.float32)
    w = jnp.asarray(weights, jnp.float32)
    thr = jnp.asarray(thresholds, jnp.float32)
    B, N = x.shape
    assert w.shape == (N, N) and thr.shape == (N,)

    n_pad = _round_up(N, 128)
    tn = tk = _pick_neuron_tile(n_pad)
    tm = min(128, _round_up(B, 8))
    b_pad = _round_up(B, tm)

    # Zero-pad: padded contraction columns are zero (no contribution); padded output
    # neurons get threshold 0 -> relu(0 - 0) = 0 and are sliced off anyway.
    x_p = jnp.zeros((b_pad, n_pad), jnp.float32).at[:B, :N].set(x)
    wt_p = jnp.zeros((n_pad, n_pad), jnp.float32).at[:N, :N].set(w.T)
    thr_p = jnp.zeros((1, n_pad), jnp.float32).at[0, :N].set(thr)

    nk = n_pad // tk

    if nk == 1:
        # Single contraction tile: no accumulator, no reduction axis.
        grid = (b_pad // tm, n_pad // tn)
        out = pl.pallas_call(
            genius_brain_kernel_single,
            out_shape=jax.ShapeDtypeStruct((b_pad, n_pad), jnp.float32),
            grid_spec=pltpu.PrefetchScalarGridSpec(
                num_scalar_prefetch=0,
                grid=grid,
                in_specs=[
                    pl.BlockSpec((tm, n_pad), lambda i, j: (i, 0)),   # x slab (full K)
                    pl.BlockSpec((n_pad, tn), lambda i, j: (0, j)),   # W.T tile (full K)
                    pl.BlockSpec((1, tn), lambda i, j: (0, j)),       # thresholds row tile
                ],
                out_specs=pl.BlockSpec((tm, tn), lambda i, j: (i, j)),
            ),
            compiler_params=pltpu.CompilerParams(
                dimension_semantics=("parallel", "parallel"),
            ),
        )(x_p, wt_p, thr_p)
    else:
        grid = (b_pad // tm, n_pad // tn, nk)
        out = pl.pallas_call(
            genius_brain_kernel_multi,
            out_shape=jax.ShapeDtypeStruct((b_pad, n_pad), jnp.float32),
            grid_spec=pltpu.PrefetchScalarGridSpec(
                num_scalar_prefetch=0,
                grid=grid,
                in_specs=[
                    pl.BlockSpec((tm, tk), lambda i, j, k: (i, k)),   # x tile
                    pl.BlockSpec((tk, tn), lambda i, j, k: (k, j)),   # W.T tile
                    pl.BlockSpec((1, tn), lambda i, j, k: (0, j)),    # thresholds row tile
                ],
                out_specs=pl.BlockSpec((tm, tn), lambda i, j, k: (i, j)),
                scratch_shapes=[pltpu.VMEM((tm, tn), jnp.float32)],
            ),
            compiler_params=pltpu.CompilerParams(
                dimension_semantics=("parallel", "parallel", "arbitrary"),
            ),
        )(x_p, wt_p, thr_p)

    return out[:B, :N]


if __name__ == "__main__":
    NEURONS = 256        # small (module default is 2048)
    BATCH = 4
    CONNECTIVITY = 0.15

    key = jax.random.PRNGKey(0)
    k_w, k_thr, k_x = jax.random.split(key, 3)

    # GeniusBrain params:
    #   weights    = (rand(N, N) - 0.5) * 2 * connectivity
    #   thresholds = randn(N) * 0.5
    weights = (jax.random.uniform(k_w, (NEURONS, NEURONS), dtype=jnp.float32) - 0.5) \
        * 2.0 * CONNECTIVITY
    thresholds = jax.random.normal(k_thr, (NEURONS,), dtype=jnp.float32) * 0.5
    x = jax.random.normal(k_x, (BATCH, NEURONS), dtype=jnp.float32)

    fire = jax.block_until_ready(genius_brain_forward(x, weights, thresholds))

    # Reference: F.linear(x, W) = x @ W.T ; (stim - thresholds).clamp(min=0)
    ref = np.maximum(
        np.asarray(x, np.float32) @ np.asarray(weights, np.float32).T
        - np.asarray(thresholds, np.float32),
        0.0,
    )

    if fire.shape != ref.shape:
        raise AssertionError(f"shape mismatch {fire.shape} vs {ref.shape}")
    if not np.allclose(np.asarray(fire), ref, rtol=1e-5, atol=1e-4):
        raise AssertionError("Pallas GeniusBrain output mismatch vs reference")

    # TODO(synk): GeniusBrain.evolve() is an RNG-driven in-place parameter mutation
    # (not part of forward); it stays in plain JAX if ever needed.
    print("KERNEL_OK")
</pallas_src>

<mosaic_0001>
module attributes {stable_mosaic.version = 11 : i64} {
  func.func @genius_brain_kernel_single(%arg0: i32, %arg1: i32, %arg2: memref<8x256xf32, #tpu.memory_space<vmem>>, %arg3: memref<256x256xf32, #tpu.memory_space<vmem>>, %arg4: memref<1x256xf32, #tpu.memory_space<vmem>>, %arg5: memref<8x256xf32, #tpu.memory_space<vmem>>) attributes {dimension_semantics = [#tpu.dimension_semantics<parallel>, #tpu.dimension_semantics<parallel>], iteration_bounds = array<i64: 1, 1>, scalar_prefetch = 0 : i64, scratch_operands = 0 : i64, tpu.core_type = #tpu.core_type<tc>, window_params = [{transform_indices = @transform_0, window_bounds = array<i64: 8, 256>}, {transform_indices = @transform_1, window_bounds = array<i64: 256, 256>}, {transform_indices = @transform_2, window_bounds = array<i64: 1, 256>}, {transform_indices = @transform_3, window_bounds = array<i64: 8, 256>}]} {
    %c0 = arith.constant 0 : index
    %c0_0 = arith.constant 0 : index
    %0 = vector.load %arg2[%c0, %c0_0] : memref<8x256xf32, #tpu.memory_space<vmem>>, vector<8x256xf32>
    %c0_1 = arith.constant 0 : index
    %c0_2 = arith.constant 0 : index
    %1 = vector.load %arg3[%c0_1, %c0_2] : memref<256x256xf32, #tpu.memory_space<vmem>>, vector<256x256xf32>
    %cst = arith.constant dense<0.000000e+00> : vector<8x256xf32>
    %2 = tpu.matmul %0, %1, %cst {dimension_numbers = #tpu.dot_dimension_numbers<[1], [0], [0], [1], [0, 0, 1, 1], [], []>} : vector<8x256xf32>, vector<256x256xf32>, vector<8x256xf32> -> vector<8x256xf32>
    %c0_3 = arith.constant 0 : index
    %c0_4 = arith.constant 0 : index
    %3 = vector.load %arg4[%c0_3, %c0_4] : memref<1x256xf32, #tpu.memory_space<vmem>>, vector<1x256xf32>
    %4 = vector.broadcast %3 : vector<1x256xf32> to vector<8x256xf32>
    %5 = arith.subf %2, %4 : vector<8x256xf32>
    %cst_5 = arith.constant 0.000000e+00 : f32
    %6 = vector.broadcast %cst_5 : f32 to vector<8x256xf32>
    %7 = arith.maximumf %5, %6 : vector<8x256xf32>
    %c0_6 = arith.constant 0 : index
    %c0_7 = arith.constant 0 : index
    %8 = vector.load %arg5[%c0_6, %c0_7] : memref<8x256xf32, #tpu.memory_space<vmem>>, vector<8x256xf32>
    tpu.vector_store %arg5[%c0_6, %c0_7], %7 {strides = array<i32>} : memref<8x256xf32, #tpu.memory_space<vmem>>, vector<8x256xf32>,
    return
  }
  func.func @transform_0(%arg0: i32, %arg1: i32) -> (i32, i32) {
    %c0_i32 = arith.constant 0 : i32
    %c0_i32_0 = arith.constant 0 : i32
    return %arg0, %c0_i32 : i32, i32
  }
  func.func @transform_1(%arg0: i32, %arg1: i32) -> (i32, i32) {
    %c0_i32 = arith.constant 0 : i32
    %c0_i32_0 = arith.constant 0 : i32
    return %c0_i32, %arg1 : i32, i32
  }
  func.func @transform_2(%arg0: i32, %arg1: i32) -> (i32, i32) {
    %c0_i32 = arith.constant 0 : i32
    %c0_i32_0 = arith.constant 0 : i32
    return %c0_i32, %arg1 : i32, i32
  }
  func.func @transform_3(%arg0: i32, %arg1: i32) -> (i32, i32) {
    %c0_i32 = arith.constant 0 : i32
    return %arg0, %arg1 : i32, i32
  }
}

</mosaic_0001>

<llo_original>
// kernel: tpu_custom_call.1
$region0: #{tpu_custom_call.1}
  #allocation0 [shape = 'u32[]', space=smem, size = 0x4, offset = 0x4, fixed_abs, tag = 'smem constant byte address 0x4 - core index']
  #allocation1 [shape = 'u32[144,128]{1,0:T(1,128)}', space=vmem, size = 0x12000, scoped, tag = 'internal scratch']
  %s0 = inlined_call_operand.hbm [shape: f32[8,256], index: 0, kind: input, shape index: {}]
  %s1 = inlined_call_operand.hbm [shape: f32[256,256], index: 1, kind: input, shape index: {}]
  %s2 = inlined_call_operand.vmem [shape: f32[1,256], index: 2, kind: input, shape index: {}]
  %s3 = inlined_call_operand.hbm [shape: f32[8,256], index: 3, kind: output, shape index: {}]
  %s4 = sld [smem:[#allocation0]]
  $region30: #{tpu_custom_call.1} parent=0
    _
  %s6 = ssub.s32 1, %s4
  %s7 = scalar_select 0, %s6, %s4
  $region1: #{tpu_custom_call.1} parent=0
    #allocation2 [shape = 'u8[8192]{0}', space=vmem, size = 0x2000, scoped, tag = 'input window, operand 0, single buffered']
    #allocation3 [shape = 's32[1]{0}', space=sflag, size = 0x4, scoped, tag = 'scoped memory for tpu_custom_call.1']
    #allocation4 [shape = 's32[1]{0}', space=sflag, size = 0x4, scoped, tag = 'scoped memory for tpu_custom_call.1']
    #allocation5 [shape = 'u8[262144]{0}', space=vmem, size = 0x40000, scoped, tag = 'input window, operand 1, single buffered']
    #allocation6 [shape = 's32[1]{0}', space=sflag, size = 0x4, scoped, tag = 'scoped memory for tpu_custom_call.1']
    #allocation7 [shape = 'u8[8192]{0}', space=vmem, size = 0x2000, scoped, tag = 'output window, operand 0, single buffered']
    %8 = vsyncpa [#allocation3], 0
    %9 = vsyncpa [#allocation6], 0
    %10 = vsyncpa [#allocation4], 0
    // Predicated region
    $region2: #{tpu_custom_call.1} parent=1 // pred_check
      _
    $region3: #{tpu_custom_call.1} parent=1 // pred_check_branch
      %12 = sbr.rel (0) target = $region5
    $region4: #{tpu_custom_call.1} parent=1 // pred_region
      %s14 = ssub.s32 256, 256
      %15 = vsyncadd [#allocation3], %s14
      %s17 = sshll.u32 [#allocation2], 4
      %s18 = int_to_ptr.vmem [resolvable:$true] %s17
      %20 = dma.hbm_to_vmem [thread:$0]  %s0, 256, %s18, [#allocation3]
    $region5: #{tpu_custom_call.1} parent=1 // pred_fallthru
      _
    // Predicated region
    $region6: #{tpu_custom_call.1} parent=1 // pred_check
      _
    $region7: #{tpu_custom_call.1} parent=1 // pred_check_branch
      %22 = sbr.rel (0) target = $region9
    $region8: #{tpu_custom_call.1} parent=1 // pred_region
      %s24 = ssub.s32 8192, 8192
      %25 = vsyncadd [#allocation6], %s24
      %s26 = sshll.u32 [#allocation5], 4
      %s27 = int_to_ptr.vmem [resolvable:$true] %s26
      %32 = dma.hbm_to_vmem [thread:$0]  %s1, 8192, %s27, [#allocation6], 256, 256, 16
    $region9: #{tpu_custom_call.1} parent=1 // pred_fallthru
      _
    // Predicated region
    $region10: #{tpu_custom_call.1} parent=1 // pred_check
      _
    $region11: #{tpu_custom_call.1} parent=1 // pred_check_branch
      %34 = sbr.rel (0) target = $region13
    $region12: #{tpu_custom_call.1} parent=1 // pred_region
      _
    $region13: #{tpu_custom_call.1} parent=1 // pred_fallthru
      _
    // Predicated region
    $region14: #{tpu_custom_call.1} parent=1 // pred_check
      _
    $region15: #{tpu_custom_call.1} parent=1 // pred_check_branch
      %36 = sbr.rel (0) target = $region17
    $region16: #{tpu_custom_call.1} parent=1 // pred_region
      %37 = dma.done [#allocation3], 256
    $region17: #{tpu_custom_call.1} parent=1 // pred_fallthru
      _
    // Predicated region
    $region18: #{tpu_custom_call.1} parent=1 // pred_check
      _
    $region19: #{tpu_custom_call.1} parent=1 // pred_check_branch
      %39 = sbr.rel (0) target = $region21
    $region20: #{tpu_custom_call.1} parent=1 // pred_region
      %40 = dma.done [#allocation6], 8192
    $region21: #{tpu_custom_call.1} parent=1 // pred_fallthru
      _
    %v41 = vld [vmem:[#allocation2] sm:$0xff]
    %v42 = vld [vmem:[#allocation2 + $0x8] sm:$0xff]
    %v43 = vld [vmem:[#allocation5] sm:$0xff]
    %v44 = vld [vmem:[#allocation5 + $0x8] sm:$0xff]
    %v45 = vld [vmem:[#allocation5 + $0x10] sm:$0xff]
    %v46 = vld [vmem:[#allocation5 + $0x18] sm:$0xff]
    %v47 = vld [vmem:[#allocation5 + $0x20] sm:$0xff]
    %v48 = vld [vmem:[#allocation5 + $0x28] sm:$0xff]
    %v49 = vld [vmem:[#allocation5 + $0x30] sm:$0xff]
    %v50 = vld [vmem:[#allocation5 + $0x38] sm:$0xff]
    %v51 = vld [vmem:[#allocation5 + $0x40] sm:$0xff]
    %v52 = vld [vmem:[#allocation5 + $0x48] sm:$0xff]
    %v53 = vld [vmem:[#allocation5 + $0x50] sm:$0xff]
    %v54 = vld [vmem:[#allocation5 + $0x58] sm:$0xff]
    %v55 = vld [vmem:[#allocation5 + $0x60] sm:$0xff]
    %v56 = vld [vmem:[#allocation5 + $0x68] sm:$0xff]
    %v57 = vld [vmem:[#allocation5 + $0x70] sm:$0xff]
    %v58 = vld [vmem:[#allocation5 + $0x78] sm:$0xff]
    %v59 = vld [vmem:[#allocation5 + $0x80] sm:$0xff]
    %v60 = vld [vmem:[#allocation5 + $0x88] sm:$0xff]
    %v61 = vld [vmem:[#allocation5 + $0x90] sm:$0xff]
    %v62 = vld [vmem:[#allocation5 + $0x98] sm:$0xff]
    %v63 = vld [vmem:[#allocation5 + $0xa0] sm:$0xff]
    %v64 = vld [vmem:[#allocation5 + $0xa8] sm:$0xff]
    %v65 = vld [vmem:[#allocation5 + $0xb0] sm:$0xff]
    %v66 = vld [vmem:[#allocation5 + $0xb8] sm:$0xff]
    %v67 = vld [vmem:[#allocation5 + $0xc0] sm:$0xff]
    %v68 = vld [vmem:[#allocation5 + $0xc8] sm:$0xff]
    %v69 = vld [vmem:[#allocation5 + $0xd0] sm:$0xff]
    %v70 = vld [vmem:[#allocation5 + $0xd8] sm:$0xff]
    %v71 = vld [vmem:[#allocation5 + $0xe0] sm:$0xff]
    %v72 = vld [vmem:[#allocation5 + $0xe8] sm:$0xff]
    %v73 = vld [vmem:[#allocation5 + $0xf0] sm:$0xff]
    %v74 = vld [vmem:[#allocation5 + $0xf8] sm:$0xff]
    %v75 = vld [vmem:[#allocation5 + $0x100] sm:$0xff]
    %v76 = vld [vmem:[#allocation5 + $0x108] sm:$0xff]
    %v77 = vld [vmem:[#allocation5 + $0x110] sm:$0xff]
    %v78 = vld [vmem:[#allocation5 + $0x118] sm:$0xff]
    %v79 = vld [vmem:[#allocation5 + $0x120] sm:$0xff]
    %v80 = vld [vmem:[#allocation5 + $0x128] sm:$0xff]
    %v81 = vld [vmem:[#allocation5 + $0x130] sm:$0xff]
    %v82 = vld [vmem:[#allocation5 + $0x138] sm:$0xff]
    %v83 = vld [vmem:[#allocation5 + $0x140] sm:$0xff]
    %v84 = vld [vmem:[#allocation5 + $0x148] sm:$0xff]
    %v85 = vld [vmem:[#allocation5 + $0x150] sm:$0xff]
    %v86 = vld [vmem:[#allocation5 + $0x158] sm:$0xff]
    %v87 = vld [vmem:[#allocation5 + $0x160] sm:$0xff]
    %v88 = vld [vmem:[#allocation5 + $0x168] sm:$0xff]
    %v89 = vld [vmem:[#allocation5 + $0x170] sm:$0xff]
    %v90 = vld [vmem:[#allocation5 + $0x178] sm:$0xff]
    %v91 = vld [vmem:[#allocation5 + $0x180] sm:$0xff]
    %v92 = vld [vmem:[#allocation5 + $0x188] sm:$0xff]
    %v93 = vld [vmem:[#allocation5 + $0x190] sm:$0xff]
    %v94 = vld [vmem:[#allocation5 + $0x198] sm:$0xff]
    %v95 = vld [vmem:[#allocation5 + $0x1a0] sm:$0xff]
    %v96 = vld [vmem:[#allocation5 + $0x1a8] sm:$0xff]
    %v97 = vld [vmem:[#allocation5 + $0x1b0] sm:$0xff]
    %v98 = vld [vmem:[#allocation5 + $0x1b8] sm:$0xff]
    %v99 = vld [vmem:[#allocation5 + $0x1c0] sm:$0xff]
    %v100 = vld [vmem:[#allocation5 + $0x1c8] sm:$0xff]
    %v101 = vld [vmem:[#allocation5 + $0x1d0] sm:$0xff]
    %v102 = vld [vmem:[#allocation5 + $0x1d8] sm:$0xff]
    %v103 = vld [vmem:[#allocation5 + $0x1e0] sm:$0xff]
    %v104 = vld [vmem:[#allocation5 + $0x1e8] sm:$0xff]
    %v105 = vld [vmem:[#allocation5 + $0x1f0] sm:$0xff]
    %v106 = vld [vmem:[#allocation5 + $0x1f8] sm:$0xff]
    %107 = vmatprep.subr.mxu0 %v74
    %108 = vmatpush1.msra.mxu0 %v73
    %109 = vmatprep.subr.mxu0 %v72
    %110 = vmatpush1.msra.mxu0 %v71
    %111 = vmatprep.subr.mxu0 %v70
    %112 = vmatpush1.msra.mxu0 %v69
    %113 = vmatprep.subr.mxu0 %v68
    %114 = vmatpush1.msra.mxu0 %v67
    %115 = vmatprep.subr.mxu0 %v66
    %116 = vmatpush1.msra.mxu0 %v65
    %117 = vmatprep.subr.mxu0 %v64
    %118 = vmatpush1.msra.mxu0 %v63
    %119 = vmatprep.subr.mxu0 %v62
    %120 = vmatpush1.msra.mxu0 %v61
    %121 = vmatprep.subr.mxu0 %v60
    %122 = vmatpush1.msra.mxu0 %v59
    %123 = vmatprep.subr.mxu0 %v58
    %124 = vmatpush1.msra.mxu0 %v57
    %125 = vmatprep.subr.mxu0 %v56
    %126 = vmatpush1.msra.mxu0 %v55
    %127 = vmatprep.subr.mxu0 %v54
    %128 = vmatpush1.msra.mxu0 %v53
    %129 = vmatprep.subr.mxu0 %v52
    %130 = vmatpush1.msra.mxu0 %v51
    %131 = vmatprep.subr.mxu0 %v50
    %132 = vmatpush1.msra.mxu0 %v49
    %133 = vmatprep.subr.mxu0 %v48
    %134 = vmatpush1.msra.mxu0 %v47
    %135 = vmatprep.subr.mxu0 %v46
    %136 = vmatpush1.msra.mxu0 %v45
    %137 = vmatprep.subr.mxu0 %v44
    %138 = vmatpush1.msra.mxu0 %v43
    %139 = vmatprep.subr.mxu0 %v106
    %140 = vmatpush2.msra.mxu0 %v105
    %141 = vmatprep.subr.mxu0 %v104
    %142 = vmatpush2.msra.mxu0 %v103
    %143 = vmatprep.subr.mxu0 %v102
    %144 = vmatpush2.msra.mxu0 %v101
    %145 = vmatprep.subr.mxu0 %v100
    %146 = vmatpush2.msra.mxu0 %v99
    %147 = vmatprep.subr.mxu0 %v98
    %148 = vmatpush2.msra.mxu0 %v97
    %149 = vmatprep.subr.mxu0 %v96
    %150 = vmatpush2.msra.mxu0 %v95
    %151 = vmatprep.subr.mxu0 %v94
    %152 = vmatpush2.msra.mxu0 %v93
    %153 = vmatprep.subr.mxu0 %v92
    %154 = vmatpush2.msra.mxu0 %v91
    %155 = vmatprep.subr.mxu0 %v90
    %156 = vmatpush2.msra.mxu0 %v89
    %157 = vmatprep.subr.mxu0 %v88
    %158 = vmatpush2.msra.mxu0 %v87
    %159 = vmatprep.subr.mxu0 %v86
    %160 = vmatpush2.msra.mxu0 %v85
    %161 = vmatprep.subr.mxu0 %v84
    %162 = vmatpush2.msra.mxu0 %v83
    %163 = vmatprep.subr.mxu0 %v82
    %164 = vmatpush2.msra.mxu0 %v81
    %165 = vmatprep.subr.mxu0 %v80
    %166 = vmatpush2.msra.mxu0 %v79
    %167 = vmatprep.subr.mxu0 %v78
    %168 = vmatpush2.msra.mxu0 %v77
    %169 = vmatprep.subr.mxu0 %v76
    %170 = vmatpush2.msra.mxu0 %v75
    %171 = vmatprep.mubr.f32.mxu0 %v42
    %172 = vmatmul.mubr.f32.gmra.mxu0 %v41
    %v173 = vpop.f32.mrf.mxu0
    %v174 = vadd.f32 0.0, %v173
    %v175 = vpop.f32.mrf.mxu0
    %v176 = vadd.f32 0.0, %v175
    %177 = vdwg.mxu0
    %v178 = vld [vmem:[%s2] sm:$0x3]
    %v180 = vlaneseq
    %v181 = vshrl.u32 %v180, 7
    %v182 = vsub.s32 0, %v181
    %v183 = vrot.slane %v178, %v182
    %v184 = vlaneseq
    %v185 = vshrl.u32 %v184, 7
    %v186 = vsub.s32 1, %v185
    %v187 = vrot.slane %v178, %v186
    %v190 = vsub.f32 %v174, %v183
    %v191 = vsub.f32 %v176, %v187
    %v192 = vmax.f32 %v190, 0.0
    %v193 = vmax.f32 %v191, 0.0
    %194 = vst [vmem:[#allocation7] sm:$0xff] %v192
    %195 = vst [vmem:[#allocation7 + $0x8] sm:$0xff] %v193
    // Predicated region
    $region22: #{tpu_custom_call.1} parent=1 // pred_check
      _
    $region23: #{tpu_custom_call.1} parent=1 // pred_check_branch
      %197 = sbr.rel (0) target = $region25
    $region24: #{tpu_custom_call.1} parent=1 // pred_region
      %s199 = ssub.s32 256, 256
      %200 = vsyncadd [#allocation4], %s199
      %s202 = sshll.u32 [#allocation7], 4
      %s203 = int_to_ptr.vmem [resolvable:$true] %s202
      %205 = dma.vmem_to_hbm [thread:$0]  %s203, 256, %s3, [#allocation4]
    $region25: #{tpu_custom_call.1} parent=1 // pred_fallthru
      _
    // Predicated region
    $region26: #{tpu_custom_call.1} parent=1 // pred_check
      _
    $region27: #{tpu_custom_call.1} parent=1 // pred_check_branch
      %207 = sbr.rel (0) target = $region29
    $region28: #{tpu_custom_call.1} parent=1 // pred_region
      %208 = dma.done [#allocation4], 256
    $region29: #{tpu_custom_call.1} parent=1 // pred_fallthru
      _
    %209 = vsyncpa [#allocation3], 1
    %210 = vsyncpa [#allocation6], 1
    %211 = vsyncpa [#allocation4], 1

</llo_original>
